<compile_context>
chip_gen: v6e
topology: v6e:2x2x1
jax: 0.10.0
libtpu: 0.0.40
codegen_flags: <defaults>
</compile_context>

<pallas_src>
from functools import partial

import jax
import jax.numpy as jnp
from jax import lax
from jax.experimental import pallas as pl
from jax.experimental.pallas import tpu as pltpu


def _conv_bn_relu_pool_kernel(cols_ref, w_ref, bias_ref, o_ref, *, n_pos, n_cols):
    """Fused conv(matmul) + 2x2 max-pool + folded-BN bias + ReLU for one batch tile.

    cols_ref : (Kp, P*n_cols)  bf16  im2col patches, columns ordered (py, px, b, hp, wp)
    w_ref    : (Cout, Kp)      bf16  conv weights with BN scale folded in (K zero-padded)
    bias_ref : (Cout, 1)       f32   folded conv/BN bias
    o_ref    : (Cout, n_cols)  f32   pooled output, columns ordered (b, hp, wp)
    """
    # Single MXU matmul for the whole batch tile; bf16 operands, f32 accumulation.
    acc = jnp.dot(w_ref[...], cols_ref[...], preferred_element_type=jnp.float32)  # (Cout, P*n_cols)
    # 2x2 max-pool over the pool-position axis (py outermost, px next); with n_cols a multiple of
    # 128 both splits land on 128-lane boundaries.
    half = (n_pos // 2) * n_cols
    m = jnp.maximum(acc[:, :half], acc[:, half:])      # fold py -> (Cout, 2*n_cols)
    m = jnp.maximum(m[:, :n_cols], m[:, n_cols:])      # fold px -> (Cout, n_cols)
    # Per-channel folded bias + ReLU (both commute with the max-pool).
    o_ref[...] = jnp.maximum(m + bias_ref[...], 0.0).astype(o_ref.dtype)


def conv2d_block_forward(x_nchw, w_conv, b_conv, gamma, beta, run_mean, run_var,
                         *, eps=1e-5, pool=2):
    B, Cin, H, W = x_nchw.shape
    Cout, _, KH, KW = w_conv.shape
    assert pool == 2, "kernel pool folds are specialized to MaxPool2d(2)"
    assert H % pool == 0 and W % pool == 0
    pad = KH // 2
    Hp, Wp = H // pool, W // pool
    Npool = Hp * Wp
    K = KH * KW * Cin
    Kp = -(-K // 16) * 16            # pad contraction dim to bf16 sublane tile (unmasked loads)
    P = pool * pool

    # Batch tile: smallest divisor of B with bt*Npool >= 128 (lane-dense output block + aligned
    # pool-fold slices).  Larger batches then give >=2 parallel grid steps (v7x dual-TC).
    bt = B
    for cand in range(1, B + 1):
        if B % cand == 0 and cand * Npool >= 128:
            bt = cand
            break
    T = B // bt
    n_cols = bt * Npool

    # ---- glue: im2col in (K, py, px, b, hp, wp) orientation, K zero-padded, bf16 ----
    xp = jnp.pad(x_nchw, ((0, 0), (0, 0), (pad, pad), (pad, pad)))              # SAME padding
    cols = jnp.stack([xp[:, :, ky:ky + H, kx:kx + W]
                      for ky in range(KH) for kx in range(KW)], axis=1)         # (B, KH*KW, Cin, H, W)
    cols = cols.reshape(T, bt, K, Hp, pool, Wp, pool)                           # (t, b, K, hp, py, wp, px)
    cols = jnp.transpose(cols, (0, 2, 4, 6, 1, 3, 5))                           # (t, K, py, px, b, hp, wp)
    cols = cols.reshape(T, K, P * n_cols)
    cols = jnp.pad(cols, ((0, 0), (0, Kp - K), (0, 0))).astype(jnp.bfloat16)

    # Fold BN (eval) into weights/bias:  scale*conv(x) + [scale*(b_conv - mean) + beta].
    scale = gamma / jnp.sqrt(run_var + eps)                                     # (Cout,)
    wmat = jnp.transpose(w_conv, (0, 2, 3, 1)).reshape(Cout, K) * scale[:, None]  # rows (ky, kx, cin)
    wmat = jnp.pad(wmat, ((0, 0), (0, Kp - K))).astype(jnp.bfloat16)
    bias = (scale * (b_conv - run_mean) + beta).reshape(Cout, 1).astype(jnp.float32)

    out = pl.pallas_call(
        partial(_conv_bn_relu_pool_kernel, n_pos=P, n_cols=n_cols),
        out_shape=jax.ShapeDtypeStruct((T, Cout, n_cols), jnp.float32),
        grid_spec=pltpu.PrefetchScalarGridSpec(
            num_scalar_prefetch=0,
            grid=(T,),
            in_specs=[
                pl.BlockSpec((None, Kp, P * n_cols), lambda t: (t, 0, 0)),   # cols (per batch tile)
                pl.BlockSpec((Cout, Kp), lambda t: (0, 0)),                  # weights (index-invariant)
                pl.BlockSpec((Cout, 1), lambda t: (0, 0)),                   # bias   (index-invariant)
            ],
            out_specs=pl.BlockSpec((None, Cout, n_cols), lambda t: (t, 0, 0)),
        ),
        compiler_params=pltpu.CompilerParams(dimension_semantics=("parallel",)),
    )(cols, wmat, bias)

    # (T, Cout, bt*Npool) with columns (b, hp, wp) -> pooled NCHW.
    out = out.reshape(T, Cout, bt, Hp, Wp)
    out = jnp.transpose(out, (0, 2, 1, 3, 4)).reshape(B, Cout, Hp, Wp)
    return out.astype(x_nchw.dtype)


def reference_forward(x_nchw, w_conv, b_conv, gamma, beta, run_mean, run_var,
                      *, eps=1e-5, pool=2):
    """Pure-JAX reference (conv -> BN eval -> ReLU -> maxpool -> dropout(eval)=id)."""
    y = lax.conv_general_dilated(
        x_nchw, w_conv, window_strides=(1, 1), padding="SAME",
        dimension_numbers=("NCHW", "OIHW", "NCHW"),
        precision=lax.Precision.HIGHEST)
    y = y + b_conv[None, :, None, None]
    y = (y - run_mean[None, :, None, None]) / jnp.sqrt(run_var[None, :, None, None] + eps)
    y = y * gamma[None, :, None, None] + beta[None, :, None, None]
    y = jnp.maximum(y, 0.0)
    B, C, H, W = y.shape
    y = y.reshape(B, C, H // pool, pool, W // pool, pool).max(axis=(3, 5))
    return y


if __name__ == "__main__":
    # Small shapes consistent with the module: batch=2, Cin=4, Cout=8, 16x16 spatial.
    B, Cin, Cout, H, W = 2, 4, 8, 16, 16
    KH = 3

    key = jax.random.PRNGKey(0)
    kx, kw, kb, kg, kbe, km, kv = jax.random.split(key, 7)

    x = jax.random.normal(kx, (B, Cin, H, W), dtype=jnp.float32)
    w_conv = 0.1 * jax.random.normal(kw, (Cout, Cin, KH, KH), dtype=jnp.float32)
    b_conv = 0.1 * jax.random.normal(kb, (Cout,), dtype=jnp.float32)
    gamma = 1.0 + 0.1 * jax.random.normal(kg, (Cout,), dtype=jnp.float32)
    beta = 0.1 * jax.random.normal(kbe, (Cout,), dtype=jnp.float32)
    run_mean = 0.1 * jax.random.normal(km, (Cout,), dtype=jnp.float32)
    run_var = jax.random.uniform(kv, (Cout,), dtype=jnp.float32, minval=0.5, maxval=1.5)

    out = conv2d_block_forward(x, w_conv, b_conv, gamma, beta, run_mean, run_var)
    out = jax.block_until_ready(out)

    ref = reference_forward(x, w_conv, b_conv, gamma, beta, run_mean, run_var)
    assert out.shape == (B, Cout, H // 2, W // 2), out.shape
    # bf16 MXU operands -> slightly looser tolerance than pure-f32.
    assert jnp.allclose(out, ref, atol=2e-2, rtol=2e-2), float(jnp.abs(out - ref).max())

    print("KERNEL_OK")
</pallas_src>

<mosaic_0001>
module attributes {stable_mosaic.version = 11 : i64} {
  func.func @_conv_bn_relu_pool_kernel(%arg0: i32, %arg1: memref<1x48x512xbf16, #tpu.memory_space<vmem>>, %arg2: memref<8x48xbf16, #tpu.memory_space<vmem>>, %arg3: memref<8x1xf32, #tpu.memory_space<vmem>>, %arg4: memref<1x8x128xf32, #tpu.memory_space<vmem>>) attributes {dimension_semantics = [#tpu.dimension_semantics<parallel>], iteration_bounds = array<i64: 1>, scalar_prefetch = 0 : i64, scratch_operands = 0 : i64, tpu.core_type = #tpu.core_type<tc>, window_params = [{transform_indices = @transform_0, window_bounds = array<i64: 1, 48, 512>}, {pipeline_mode = #tpu.pipeline_mode<synchronous>, transform_indices = @transform_1, window_bounds = array<i64: 8, 48>}, {pipeline_mode = #tpu.pipeline_mode<synchronous>, transform_indices = @transform_2, window_bounds = array<i64: 8, 1>}, {transform_indices = @transform_3, window_bounds = array<i64: 1, 8, 128>}]} {
    %c0 = arith.constant 0 : index
    %c0_0 = arith.constant 0 : index
    %0 = vector.load %arg2[%c0, %c0_0] : memref<8x48xbf16, #tpu.memory_space<vmem>>, vector<8x48xbf16>
    %c0_1 = arith.constant 0 : index
    %c0_2 = arith.constant 0 : index
    %c0_3 = arith.constant 0 : index
    %1 = vector.load %arg1[%c0_1, %c0_2, %c0_3] : memref<1x48x512xbf16, #tpu.memory_space<vmem>>, vector<1x48x512xbf16>
    %2 = vector.shape_cast %1 : vector<1x48x512xbf16> to vector<48x512xbf16>
    %cst = arith.constant dense<0.000000e+00> : vector<8x512xf32>
    %3 = tpu.matmul %0, %2, %cst {dimension_numbers = #tpu.dot_dimension_numbers<[1], [0], [0], [1], [0, 0, 1, 1], [], []>} : vector<8x48xbf16>, vector<48x512xbf16>, vector<8x512xf32> -> vector<8x512xf32>
    %4 = vector.extract_strided_slice %3 {offsets = [0, 0], sizes = [8, 256], strides = [1, 1]} : vector<8x512xf32> to vector<8x256xf32>
    %5 = vector.extract_strided_slice %3 {offsets = [0, 256], sizes = [8, 256], strides = [1, 1]} : vector<8x512xf32> to vector<8x256xf32>
    %6 = arith.maximumf %4, %5 : vector<8x256xf32>
    %7 = vector.extract_strided_slice %6 {offsets = [0, 0], sizes = [8, 128], strides = [1, 1]} : vector<8x256xf32> to vector<8x128xf32>
    %8 = vector.extract_strided_slice %6 {offsets = [0, 128], sizes = [8, 128], strides = [1, 1]} : vector<8x256xf32> to vector<8x128xf32>
    %9 = arith.maximumf %7, %8 : vector<8x128xf32>
    %c0_4 = arith.constant 0 : index
    %c0_5 = arith.constant 0 : index
    %10 = vector.load %arg3[%c0_4, %c0_5] : memref<8x1xf32, #tpu.memory_space<vmem>>, vector<8x1xf32>
    %11 = vector.broadcast %10 : vector<8x1xf32> to vector<8x128xf32>
    %12 = arith.addf %9, %11 : vector<8x128xf32>
    %cst_6 = arith.constant 0.000000e+00 : f32
    %13 = vector.broadcast %cst_6 : f32 to vector<8x128xf32>
    %14 = arith.maximumf %12, %13 : vector<8x128xf32>
    %c0_7 = arith.constant 0 : index
    %c0_8 = arith.constant 0 : index
    %c0_9 = arith.constant 0 : index
    %15 = vector.load %arg4[%c0_7, %c0_8, %c0_9] : memref<1x8x128xf32, #tpu.memory_space<vmem>>, vector<1x8x128xf32>
    %16 = vector.shape_cast %15 : vector<1x8x128xf32> to vector<8x128xf32>
    %17 = vector.shape_cast %14 : vector<8x128xf32> to vector<1x8x128xf32>
    tpu.vector_store %arg4[%c0_7, %c0_8, %c0_9], %17 {strides = array<i32>} : memref<1x8x128xf32, #tpu.memory_space<vmem>>, vector<1x8x128xf32>,
    return
  }
  func.func @transform_0(%arg0: i32) -> (i32, i32, i32) {
    %c0_i32 = arith.constant 0 : i32
    %c0_i32_0 = arith.constant 0 : i32
    %c0_i32_1 = arith.constant 0 : i32
    return %arg0, %c0_i32, %c0_i32_0 : i32, i32, i32
  }
  func.func @transform_1(%arg0: i32) -> (i32, i32) {
    %c0_i32 = arith.constant 0 : i32
    %c0_i32_0 = arith.constant 0 : i32
    %c0_i32_1 = arith.constant 0 : i32
    return %c0_i32, %c0_i32_0 : i32, i32
  }
  func.func @transform_2(%arg0: i32) -> (i32, i32) {
    %c0_i32 = arith.constant 0 : i32
    %c0_i32_0 = arith.constant 0 : i32
    %c0_i32_1 = arith.constant 0 : i32
    return %c0_i32, %c0_i32_0 : i32, i32
  }
  func.func @transform_3(%arg0: i32) -> (i32, i32, i32) {
    %c0_i32 = arith.constant 0 : i32
    %c0_i32_0 = arith.constant 0 : i32
    %c0_i32_1 = arith.constant 0 : i32
    return %arg0, %c0_i32, %c0_i32_0 : i32, i32, i32
  }
}

</mosaic_0001>

<llo_original>
// kernel: tpu_custom_call.1
$region0: #{tpu_custom_call.1}
  #allocation0 [shape = 'u32[]', space=smem, size = 0x4, offset = 0x4, fixed_abs, tag = 'smem constant byte address 0x4 - core index']
  #allocation1 [shape = 'u32[144,128]{1,0:T(1,128)}', space=vmem, size = 0x12000, scoped, tag = 'internal scratch']
  %s0 = inlined_call_operand.hbm [shape: bf16[1,48,512], index: 0, kind: input, shape index: {}]
  %s1 = inlined_call_operand.vmem [shape: bf16[8,48], index: 1, kind: input, shape index: {}]
  %s2 = inlined_call_operand.vmem [shape: f32[8,1], index: 2, kind: input, shape index: {}]
  %s3 = inlined_call_operand.hbm [shape: f32[1,8,128], index: 3, kind: output, shape index: {}]
  %s4 = sld [smem:[#allocation0]]
  $region26: #{tpu_custom_call.1} parent=0
    _
  %s6 = ssub.s32 1, %s4
  %s7 = scalar_select 0, %s6, %s4
  $region1: #{tpu_custom_call.1} parent=0
    #allocation2 [shape = 'u8[49152]{0}', space=vmem, size = 0xc000, scoped, tag = 'input window, operand 0, single buffered']
    #allocation3 [shape = 's32[1]{0}', space=sflag, size = 0x4, scoped, tag = 'scoped memory for tpu_custom_call.1']
    #allocation4 [shape = 's32[1]{0}', space=sflag, size = 0x4, scoped, tag = 'scoped memory for tpu_custom_call.1']
    #allocation5 [shape = 'u8[4096]{0}', space=vmem, size = 0x1000, scoped, tag = 'output window, operand 0, single buffered']
    %8 = vsyncpa [#allocation3], 0
    %9 = vsyncpa [#allocation4], 0
    // Predicated region
    $region2: #{tpu_custom_call.1} parent=1 // pred_check
      _
    $region3: #{tpu_custom_call.1} parent=1 // pred_check_branch
      %11 = sbr.rel (0) target = $region5
    $region4: #{tpu_custom_call.1} parent=1 // pred_region
      %s13 = ssub.s32 1536, 1536
      %14 = vsyncadd [#allocation3], %s13
      %s15 = sshll.u32 [#allocation2], 4
      %s16 = int_to_ptr.vmem [resolvable:$true] %s15
      %21 = dma.hbm_to_vmem [thread:$0]  %s0, 1536, %s16, [#allocation3], 256, 256, 16
    $region5: #{tpu_custom_call.1} parent=1 // pred_fallthru
      _
    // Predicated region
    $region6: #{tpu_custom_call.1} parent=1 // pred_check
      _
    $region7: #{tpu_custom_call.1} parent=1 // pred_check_branch
      %23 = sbr.rel (0) target = $region9
    $region8: #{tpu_custom_call.1} parent=1 // pred_region
      _
    $region9: #{tpu_custom_call.1} parent=1 // pred_fallthru
      _
    // Predicated region
    $region10: #{tpu_custom_call.1} parent=1 // pred_check
      _
    $region11: #{tpu_custom_call.1} parent=1 // pred_check_branch
      %25 = sbr.rel (0) target = $region13
    $region12: #{tpu_custom_call.1} parent=1 // pred_region
      _
    $region13: #{tpu_custom_call.1} parent=1 // pred_fallthru
      _
    // Predicated region
    $region14: #{tpu_custom_call.1} parent=1 // pred_check
      _
    $region15: #{tpu_custom_call.1} parent=1 // pred_check_branch
      %27 = sbr.rel (0) target = $region17
    $region16: #{tpu_custom_call.1} parent=1 // pred_region
      %28 = dma.done [#allocation3], 1536
    $region17: #{tpu_custom_call.1} parent=1 // pred_fallthru
      _
    %v30 = vld [vmem:[%s1] sm:$0xf]
    %v31 = vld [vmem:[#allocation2] sm:$0xff]
    %v32 = vld [vmem:[#allocation2 + $0x8] sm:$0xff]
    %v33 = vld [vmem:[#allocation2 + $0x10] sm:$0xff]
    %v34 = vld [vmem:[#allocation2 + $0x18] sm:$0xff]
    %v35 = vld [vmem:[#allocation2 + $0x20] sm:$0xff]
    %v36 = vld [vmem:[#allocation2 + $0x28] sm:$0xff]
    %v37 = vld [vmem:[#allocation2 + $0x30] sm:$0xff]
    %v38 = vld [vmem:[#allocation2 + $0x38] sm:$0xff]
    %v39 = vld [vmem:[#allocation2 + $0x40] sm:$0xff]
    %v40 = vld [vmem:[#allocation2 + $0x48] sm:$0xff]
    %v41 = vld [vmem:[#allocation2 + $0x50] sm:$0xff]
    %v42 = vld [vmem:[#allocation2 + $0x58] sm:$0xff]
    %v55 = vunpack.c.l.b16 %v31
    %v56 = vunpack.c.h.b16 %v31
    %v57 = vunpack.c.l.b16 %v32
    %v58 = vunpack.c.h.b16 %v32
    %v59 = vunpack.c.l.b16 %v33
    %v60 = vunpack.c.h.b16 %v33
    %v61 = vunpack.c.l.b16 %v34
    %v62 = vunpack.c.h.b16 %v34
    %v63 = vunpack.c.l.b16 %v35
    %v64 = vunpack.c.h.b16 %v35
    %v65 = vunpack.c.l.b16 %v36
    %v66 = vunpack.c.h.b16 %v36
    %v67 = vunpack.c.l.b16 %v37
    %v68 = vunpack.c.h.b16 %v37
    %v69 = vunpack.c.l.b16 %v38
    %v70 = vunpack.c.h.b16 %v38
    %v71 = vunpack.c.l.b16 %v39
    %v72 = vunpack.c.h.b16 %v39
    %v73 = vunpack.c.l.b16 %v40
    %v74 = vunpack.c.h.b16 %v40
    %v75 = vunpack.c.l.b16 %v41
    %v76 = vunpack.c.h.b16 %v41
    %v77 = vunpack.c.l.b16 %v42
    %v78 = vunpack.c.h.b16 %v42
    %v79 = vpack.c.b16 %v59, %v55
    %v80 = vpack.c.b16 %v60, %v56
    %v81 = vpack.c.b16 %v61, %v57
    %v82 = vpack.c.b16 %v62, %v58
    %v83 = vpack.c.b16 %v67, %v63
    %v84 = vpack.c.b16 %v68, %v64
    %v85 = vpack.c.b16 %v69, %v65
    %v86 = vpack.c.b16 %v70, %v66
    %v87 = vpack.c.b16 %v75, %v71
    %v88 = vpack.c.b16 %v76, %v72
    %v89 = vpack.c.b16 %v77, %v73
    %v90 = vpack.c.b16 %v78, %v74
    %vm103 = vcmask 392192
    %v105 = vsel %vm103, %v30, 0
    %107 = vmatprep.subr.bf16.mxu0 0
    %108 = vmatpush1.bf16.msra.mxu0 0
    %109 = vmatprep.subr.bf16.mxu0 0
    %110 = vmatpush1.bf16.msra.mxu0 0
    %111 = vmatprep.subr.bf16.mxu0 0
    %112 = vmatpush1.bf16.msra.mxu0 0
    %113 = vmatprep.subr.bf16.mxu0 0
    %114 = vmatpush1.bf16.msra.mxu0 0
    %115 = vmatprep.subr.bf16.mxu0 0
    %116 = vmatpush1.bf16.msra.mxu0 0
    %117 = vmatprep.subr.bf16.mxu0 %v88
    %118 = vmatpush1.bf16.msra.mxu0 %v87
    %119 = vmatprep.subr.bf16.mxu0 %v84
    %120 = vmatpush1.bf16.msra.mxu0 %v83
    %121 = vmatprep.subr.bf16.mxu0 %v80
    %122 = vmatpush1.bf16.msra.mxu0 %v79
    %123 = vmatprep.subr.bf16.mxu0 0
    %124 = vmatpush2.bf16.msra.mxu0 0
    %125 = vmatprep.subr.bf16.mxu0 0
    %126 = vmatpush2.bf16.msra.mxu0 0
    %127 = vmatprep.subr.bf16.mxu0 0
    %128 = vmatpush2.bf16.msra.mxu0 0
    %129 = vmatprep.subr.bf16.mxu0 0
    %130 = vmatpush2.bf16.msra.mxu0 0
    %131 = vmatprep.subr.bf16.mxu0 0
    %132 = vmatpush2.bf16.msra.mxu0 0
    %133 = vmatprep.subr.bf16.mxu0 0
    %134 = vmatpush2.bf16.msra.mxu0 0
    %135 = vmatprep.subr.bf16.mxu0 0
    %136 = vmatpush2.bf16.msra.mxu0 0
    %137 = vmatprep.subr.bf16.mxu0 0
    %138 = vmatpush2.bf16.msra.mxu0 0
    %139 = vmatprep.mubr.bf16.mxu0 0
    %140 = vmatmul.mubr.bf16.gmra.mxu0 %v105
    %v141 = vpop.f32.mrf.mxu0
    %v142 = vadd.f32 0.0, %v141
    %v143 = vpop.f32.mrf.mxu0
    %v144 = vadd.f32 0.0, %v143
    %v145 = vpop.f32.mrf.mxu0
    %v146 = vpop.f32.mrf.mxu0
    %147 = vdwg.mxu0
    %148 = vmatprep.subr.bf16.mxu0 0
    %149 = vmatpush1.bf16.msra.mxu0 0
    %150 = vmatprep.subr.bf16.mxu0 0
    %151 = vmatpush1.bf16.msra.mxu0 0
    %152 = vmatprep.subr.bf16.mxu0 0
    %153 = vmatpush1.bf16.msra.mxu0 0
    %154 = vmatprep.subr.bf16.mxu0 0
    %155 = vmatpush1.bf16.msra.mxu0 0
    %156 = vmatprep.subr.bf16.mxu0 0
    %157 = vmatpush1.bf16.msra.mxu0 0
    %158 = vmatprep.subr.bf16.mxu0 %v90
    %159 = vmatpush1.bf16.msra.mxu0 %v89
    %160 = vmatprep.subr.bf16.mxu0 %v86
    %161 = vmatpush1.bf16.msra.mxu0 %v85
    %162 = vmatprep.subr.bf16.mxu0 %v82
    %163 = vmatpush1.bf16.msra.mxu0 %v81
    %164 = vmatprep.subr.bf16.mxu0 0
    %165 = vmatpush2.bf16.msra.mxu0 0
    %166 = vmatprep.subr.bf16.mxu0 0
    %167 = vmatpush2.bf16.msra.mxu0 0
    %168 = vmatprep.subr.bf16.mxu0 0
    %169 = vmatpush2.bf16.msra.mxu0 0
    %170 = vmatprep.subr.bf16.mxu0 0
    %171 = vmatpush2.bf16.msra.mxu0 0
    %172 = vmatprep.subr.bf16.mxu0 0
    %173 = vmatpush2.bf16.msra.mxu0 0
    %174 = vmatprep.subr.bf16.mxu0 0
    %175 = vmatpush2.bf16.msra.mxu0 0
    %176 = vmatprep.subr.bf16.mxu0 0
    %177 = vmatpush2.bf16.msra.mxu0 0
    %178 = vmatprep.subr.bf16.mxu0 0
    %179 = vmatpush2.bf16.msra.mxu0 0
    %180 = vmatprep.mubr.bf16.mxu0 0
    %181 = vmatmul.mubr.bf16.gmra.mxu0 %v105
    %v182 = vpop.f32.mrf.mxu0
    %v183 = vadd.f32 0.0, %v182
    %v184 = vpop.f32.mrf.mxu0
    %v185 = vadd.f32 0.0, %v184
    %v186 = vpop.f32.mrf.mxu0
    %v187 = vpop.f32.mrf.mxu0
    %188 = vdwg.mxu0
    %v189 = vmax.f32 %v142, %v183
    %v190 = vmax.f32 %v144, %v185
    %v191 = vmax.f32 %v189, %v190
    %v192 = vld [vmem:[%s2] sm:$0xff]
    %194 = vset.pattern.permute.xlu0 0
    %195 = vperm.xlu0 %194, %v192
    %v196 = vpop.permute.xlu0 %195
    %v198 = vadd.f32 %v191, %v196
    %v199 = vmax.f32 %v198, 0.0
    %200 = vst [vmem:[#allocation5] sm:$0xff] %v199
    // Predicated region
    $region18: #{tpu_custom_call.1} parent=1 // pred_check
      _
    $region19: #{tpu_custom_call.1} parent=1 // pred_check_branch
      %202 = sbr.rel (0) target = $region21
    $region20: #{tpu_custom_call.1} parent=1 // pred_region
      %s204 = ssub.s32 128, 128
      %205 = vsyncadd [#allocation4], %s204
      %s207 = sshll.u32 [#allocation5], 4
      %s208 = int_to_ptr.vmem [resolvable:$true] %s207
      %210 = dma.vmem_to_hbm [thread:$0]  %s208, 128, %s3, [#allocation4]
    $region21: #{tpu_custom_call.1} parent=1 // pred_fallthru
      _
    // Predicated region
    $region22: #{tpu_custom_call.1} parent=1 // pred_check
      _
    $region23: #{tpu_custom_call.1} parent=1 // pred_check_branch
      %212 = sbr.rel (0) target = $region25
    $region24: #{tpu_custom_call.1} parent=1 // pred_region
      %213 = dma.done [#allocation4], 128
    $region25: #{tpu_custom_call.1} parent=1 // pred_fallthru
      _
    %214 = vsyncpa [#allocation3], 1
    %215 = vsyncpa [#allocation4], 1

</llo_original>
